<compile_context>
chip_gen: v7x
topology: tpu7x:2x2x1
jax: 0.10.0
libtpu: 0.0.40
codegen_flags: <defaults>
</compile_context>

<pallas_src>
import jax
import jax.numpy as jnp
from jax.experimental import pallas as pl
from jax.experimental.pallas import tpu as pltpu

PI = 3.141592653589793
LANE = 128


def _gaussian_rbf_kernel(x_ref, b_ref, o_ref):
    # Elementwise hot path on the VPU/EUP: subtract, square, scale, exp.
    diff = x_ref[...] - b_ref[...]          # (tr, tc) - (1, tc) broadcast
    o_ref[...] = jnp.exp(-PI * diff * diff)


def _round_up(n, m):
    return ((n + m - 1) // m) * m


def _rbf_2d(x2d, b_row, *, tile_r, tile_c):
    """x2d: (R, C), b_row: (1, C) -> (R, C), elementwise RBF.

    Blocks are multiples of (8, 128); boundary blocks that overhang the array
    are masked by Pallas (safe for an elementwise op), so no wrapper padding
    and no extra HBM traffic for non-divisible shapes.
    """
    R, C = x2d.shape

    tr = min(_round_up(R, 8), max(8, (tile_r // 8) * 8))
    tc = min(_round_up(C, LANE), max(LANE, (tile_c // LANE) * LANE))
    n_r = pl.cdiv(R, tr)
    n_c = pl.cdiv(C, tc)

    return pl.pallas_call(
        _gaussian_rbf_kernel,
        out_shape=jax.ShapeDtypeStruct((R, C), x2d.dtype),
        grid_spec=pltpu.PrefetchScalarGridSpec(
            num_scalar_prefetch=0,
            # Row tiles innermost: b's block index (0, j) is unchanged across
            # the inner loop, so the b tile stays resident in VMEM.
            grid=(n_c, n_r),
            in_specs=[
                pl.BlockSpec((tr, tc), lambda j, i: (i, j)),
                pl.BlockSpec((1, tc), lambda j, i: (0, j)),
            ],
            out_specs=pl.BlockSpec((tr, tc), lambda j, i: (i, j)),
        ),
        compiler_params=pltpu.CompilerParams(
            dimension_semantics=("parallel", "parallel"),
        ),
        cost_estimate=pl.CostEstimate(
            flops=3 * R * C,
            transcendentals=R * C,
            bytes_accessed=2 * R * C * x2d.dtype.itemsize + C * b_row.dtype.itemsize,
        ),
    )(x2d, b_row)


def gaussian_rbf(x, b, *, tile_r=1024, tile_c=512):
    """y = exp(-pi * (x - b)^2).  x: (..., D), b: (D,)."""
    D = b.shape[-1]
    assert x.shape[-1] == D, "last dim of x must match b"
    lead_shape = x.shape[:-1]
    B = 1
    for s in lead_shape:
        B *= s
    x2 = x.reshape(B, D)

    if D < LANE and LANE % D == 0:
        # Lane-dense repack for narrow feature dims: view x as rows of L lanes
        # (L a multiple of 128, hence of D).  b is periodic with period D
        # along each lane row, so tiling it L//D times preserves the
        # elementwise math exactly.  Output is unpacked afterwards.
        N = B * D
        L_max = max(LANE, (max(tile_c, LANE) // LANE) * LANE)
        # Prefer an L that divides N exactly -> contiguous reshape, no pad copy.
        L = None
        for cand in range(L_max, 0, -LANE):
            if N % cand == 0:
                L = cand
                break
        if L is None:
            L = min(L_max, _round_up(N, LANE))

        rows = pl.cdiv(N, L)
        pad = rows * L - N
        x_flat = x2.reshape(-1)
        if pad:
            x_flat = jnp.pad(x_flat, (0, pad))
        b_row = jnp.tile(b, L // D).reshape(1, L)
        out2d = _rbf_2d(x_flat.reshape(rows, L), b_row, tile_r=tile_r, tile_c=L)
        out = out2d.reshape(-1)
        if pad:
            out = out[:N]
    else:
        out = _rbf_2d(x2, b.reshape(1, D), tile_r=tile_r, tile_c=tile_c)

    return out.reshape(*lead_shape, D)


if __name__ == "__main__":
    key = jax.random.PRNGKey(0)
    kx, kb = jax.random.split(key)

    # Small shapes consistent with the module (lane-dense narrow-D path).
    batch, input_dim = 2, 32
    x = jax.random.normal(kx, (batch, input_dim), dtype=jnp.float32)
    b = jax.random.normal(kb, (input_dim,), dtype=jnp.float32)

    out = jax.block_until_ready(gaussian_rbf(x, b))
    ref = jnp.exp(-PI * (x - b[None, :]) ** 2)
    assert out.shape == (batch, input_dim)
    assert out.dtype == jnp.float32
    assert jnp.allclose(out, ref, atol=1e-6, rtol=1e-6)

    # Also exercise the general 2-axis tiled path (non-divisible shapes,
    # multi-step pipelined grid, Pallas edge masking instead of padding).
    x2 = jax.random.normal(kx, (1030, 300), dtype=jnp.float32)
    b2 = jax.random.normal(kb, (300,), dtype=jnp.float32)
    out2 = jax.block_until_ready(gaussian_rbf(x2, b2))
    ref2 = jnp.exp(-PI * (x2 - b2[None, :]) ** 2)
    assert out2.shape == (1030, 300)
    assert jnp.allclose(out2, ref2, atol=1e-6, rtol=1e-5)

    # Narrow-D path where the element count divides a lane-dense row width
    # (no pad copy at all).
    x3 = jax.random.normal(kx, (64, 32), dtype=jnp.float32)
    out3 = jax.block_until_ready(gaussian_rbf(x3, b))
    ref3 = jnp.exp(-PI * (x3 - b[None, :]) ** 2)
    assert jnp.allclose(out3, ref3, atol=1e-6, rtol=1e-5)

    print("KERNEL_OK")
</pallas_src>

<mosaic_0001>
module attributes {stable_mosaic.version = 11 : i64} {
  func.func @_gaussian_rbf_kernel(%arg0: i32, %arg1: i32, %arg2: memref<8x128xf32, #tpu.memory_space<vmem>>, %arg3: memref<1x128xf32, #tpu.memory_space<vmem>>, %arg4: memref<8x128xf32, #tpu.memory_space<vmem>>) attributes {dimension_semantics = [#tpu.dimension_semantics<parallel>, #tpu.dimension_semantics<parallel>], iteration_bounds = array<i64: 1, 1>, scalar_prefetch = 0 : i64, scratch_operands = 0 : i64, tpu.core_type = #tpu.core_type<tc>, window_params = [{transform_indices = @transform_0, window_bounds = array<i64: 8, 128>}, {transform_indices = @transform_1, window_bounds = array<i64: 1, 128>}, {transform_indices = @transform_2, window_bounds = array<i64: 8, 128>}]} {
    %c0 = arith.constant 0 : index
    %c0_0 = arith.constant 0 : index
    %0 = vector.load %arg2[%c0, %c0_0] : memref<8x128xf32, #tpu.memory_space<vmem>>, vector<8x128xf32>
    %c0_1 = arith.constant 0 : index
    %c0_2 = arith.constant 0 : index
    %1 = vector.load %arg3[%c0_1, %c0_2] : memref<1x128xf32, #tpu.memory_space<vmem>>, vector<1x128xf32>
    %2 = vector.broadcast %1 : vector<1x128xf32> to vector<8x128xf32>
    %3 = arith.subf %0, %2 : vector<8x128xf32>
    %cst = arith.constant -3.14159274 : f32
    %4 = vector.broadcast %cst : f32 to vector<8x128xf32>
    %5 = arith.mulf %4, %3 : vector<8x128xf32>
    %6 = arith.mulf %5, %3 : vector<8x128xf32>
    %7 = math.exp %6 : vector<8x128xf32>
    %c0_3 = arith.constant 0 : index
    %c0_4 = arith.constant 0 : index
    %8 = vector.load %arg4[%c0_3, %c0_4] : memref<8x128xf32, #tpu.memory_space<vmem>>, vector<8x128xf32>
    tpu.vector_store %arg4[%c0_3, %c0_4], %7 {strides = array<i32>} : memref<8x128xf32, #tpu.memory_space<vmem>>, vector<8x128xf32>,
    return
  }
  func.func @transform_0(%arg0: i32, %arg1: i32) -> (i32, i32) {
    %c0_i32 = arith.constant 0 : i32
    return %arg1, %arg0 : i32, i32
  }
  func.func @transform_1(%arg0: i32, %arg1: i32) -> (i32, i32) {
    %c0_i32 = arith.constant 0 : i32
    %c0_i32_0 = arith.constant 0 : i32
    return %c0_i32, %arg0 : i32, i32
  }
  func.func @transform_2(%arg0: i32, %arg1: i32) -> (i32, i32) {
    %c0_i32 = arith.constant 0 : i32
    return %arg1, %arg0 : i32, i32
  }
}

</mosaic_0001>

<llo_original>
// kernel: tpu_custom_call.1
$region0: #{tpu_custom_call.1}
  #allocation0 [shape = 'u32[]', space=smem, size = 0x4, offset = 0x4, fixed_abs, tag = 'smem constant byte address 0x4 - core index']
  #allocation1 [shape = 'u32[144,128]{1,0:T(1,128)}', space=vmem, size = 0x12000, scoped, tag = 'internal scratch']
  %s0 = inlined_call_operand.hbm [shape: f32[1,128], index: 0, kind: input, shape index: {}]
  %s1 = inlined_call_operand.vmem [shape: f32[1,128], index: 1, kind: input, shape index: {}]
  %s2 = inlined_call_operand.hbm [shape: f32[1,128], index: 2, kind: output, shape index: {}]
  %s3 = sld [smem:[#allocation0]]
  $region22: #{tpu_custom_call.1} parent=0
    _
  %s5 = ssub.s32 1, %s3
  %s6 = scalar_select 0, %s5, %s3
  $region1: #{tpu_custom_call.1} parent=0
    #allocation2 [shape = 'u8[4096]{0}', space=vmem, size = 0x1000, scoped, tag = 'input window, operand 0, single buffered']
    #allocation3 [shape = 's32[1]{0}', space=sflag, size = 0x4, scoped, tag = 'scoped memory for tpu_custom_call.1']
    #allocation4 [shape = 's32[1]{0}', space=sflag, size = 0x4, scoped, tag = 'scoped memory for tpu_custom_call.1']
    #allocation5 [shape = 'u8[4096]{0}', space=vmem, size = 0x1000, scoped, tag = 'output window, operand 0, single buffered']
    %7 = vsyncpa [#allocation3], 0
    %8 = vsyncpa [#allocation4], 0
    // Predicated region
    $region2: #{tpu_custom_call.1} parent=1 // pred_check
      _
    $region3: #{tpu_custom_call.1} parent=1 // pred_check_branch
      %10 = sbr.rel (0) target = $region5
    $region4: #{tpu_custom_call.1} parent=1 // pred_region
      %s12 = ssub.s32 128, 16
      %13 = vsyncadd [#allocation3], %s12
      %s14 = sshll.u32 [#allocation2], 4
      %s15 = int_to_ptr.vmem [resolvable:$true] %s14
      %20 = dma.hbm_to_vmem [thread:$0]  %s0, 16, %s15, [#allocation3], 16, 16, 1
    $region5: #{tpu_custom_call.1} parent=1 // pred_fallthru
      _
    // Predicated region
    $region6: #{tpu_custom_call.1} parent=1 // pred_check
      _
    $region7: #{tpu_custom_call.1} parent=1 // pred_check_branch
      %22 = sbr.rel (0) target = $region9
    $region8: #{tpu_custom_call.1} parent=1 // pred_region
      _
    $region9: #{tpu_custom_call.1} parent=1 // pred_fallthru
      _
    // Predicated region
    $region10: #{tpu_custom_call.1} parent=1 // pred_check
      _
    $region11: #{tpu_custom_call.1} parent=1 // pred_check_branch
      %24 = sbr.rel (0) target = $region13
    $region12: #{tpu_custom_call.1} parent=1 // pred_region
      %25 = dma.done [#allocation3], 128
    $region13: #{tpu_custom_call.1} parent=1 // pred_fallthru
      _
    %v26 = vld [vmem:[#allocation2] sm:$0xff]
    %v27 = vld [vmem:[%s1] sm:$0x1]
    %v29 = vlaneseq
    %v30 = vshrl.u32 %v29, 7
    %v31 = vsub.s32 0, %v30
    %v32 = vrot.slane %v27, %v31
    %v34 = vsub.f32 %v26, %v32
    %v35 = vmul.f32 %v34, -3.1415927
    %v36 = vmul.f32 %v35, %v34
    %v37 = vmul.f32 %v36, 1.442695
    %v38 = vpow.pop %v37
    %39 = vst [vmem:[#allocation5] sm:$0xff] %v38
    // Predicated region
    $region14: #{tpu_custom_call.1} parent=1 // pred_check
      _
    $region15: #{tpu_custom_call.1} parent=1 // pred_check_branch
      %41 = sbr.rel (0) target = $region17
    $region16: #{tpu_custom_call.1} parent=1 // pred_region
      %s43 = ssub.s32 128, 16
      %44 = vsyncadd [#allocation4], %s43
      %s45 = sshll.u32 [#allocation5], 4
      %s46 = int_to_ptr.vmem [resolvable:$true] %s45
      %51 = dma.vmem_to_hbm [thread:$0]  %s46, 16, %s2, [#allocation4], 16, 16, 1
    $region17: #{tpu_custom_call.1} parent=1 // pred_fallthru
      _
    // Predicated region
    $region18: #{tpu_custom_call.1} parent=1 // pred_check
      _
    $region19: #{tpu_custom_call.1} parent=1 // pred_check_branch
      %53 = sbr.rel (0) target = $region21
    $region20: #{tpu_custom_call.1} parent=1 // pred_region
      %54 = dma.done [#allocation4], 128
    $region21: #{tpu_custom_call.1} parent=1 // pred_fallthru
      _
    %55 = vsyncpa [#allocation3], 1
    %56 = vsyncpa [#allocation4], 1

</llo_original>
